<compile_context>
chip_gen: v6e
topology: v6e:2x2x1
jax: 0.10.0
libtpu: 0.0.40
codegen_flags: <defaults>
</compile_context>

<pallas_src>
import math

import jax
import jax.numpy as jnp
from jax.experimental import pallas as pl
from jax.experimental.pallas import tpu as pltpu

_LANES = 128
_MIN_PALLAS_BYTES = 256 * 1024  # below this, launch/plumbing overhead dominates


def _default_tile_bytes():
    """Generation-tuned target bytes per (TB, TN) block."""
    try:
        kind = jax.devices()[0].device_kind.lower()
    except Exception:
        kind = ""
    # v5e: only ~16 MiB default scoped VMEM and slower HBM -> keep 2 MiB tiles
    # (in+out double-buffered footprint ~8 MiB).  v6e/v7x: bigger tiles hide
    # the ~0.35 us/step pipeline overhead against the faster HBM.
    if "v5 lite" in kind or "v5e" in kind or "v5litepod" in kind:
        return 2 * 1024 * 1024
    return 4 * 1024 * 1024


def _sublane_granularity(dtype):
    # Packed dtypes store 2/4 rows per 32-bit sublane: bf16 -> 16, int8/fp8 -> 32.
    return max(8, 32 // jnp.dtype(dtype).itemsize)


def _choose_tiles(B, F, itemsize, sub_gran, target_bytes):
    """Pick (tb, tn): tb*tn*itemsize ~= target_bytes, lane/sublane aligned."""
    Fp = -(-F // _LANES) * _LANES
    tb_min = min(B, sub_gran)
    tn_max = max(_LANES, (target_bytes // (tb_min * itemsize)) // _LANES * _LANES)
    tn = min(Fp, tn_max)
    if tn >= Fp:
        tn = F  # full-extent feature block (always legal, even if F % 128 != 0)
    tb_budget = max(1, target_bytes // (tn * itemsize))
    if tb_budget >= B:
        tb = B  # full-extent batch block (always legal)
    else:
        tb = min(B, max(sub_gran, (tb_budget // sub_gran) * sub_gran))
    return tb, tn


def _drop_path_kernel(x_ref, s_ref, o_ref):
    # x_ref / o_ref: (TB, TN) tile of the flattened activation.
    # s_ref: (TB, 1) float32 per-sample scale (0.0 or 1/keep_prob); broadcasts
    # over the lane dimension.  Compute in f32 (matches the reference divide up
    # to 1 ulp; the kernel is HBM-bound so the upcast is wall-clock neutral).
    s = s_ref[...]
    o_ref[...] = (x_ref[...].astype(jnp.float32) * s).astype(o_ref.dtype)


def _drop_path_pallas(x_flat, scale, tile_bytes):
    """x_flat: (B, F); scale: (B, 1) float32."""
    B, F = x_flat.shape
    itemsize = jnp.dtype(x_flat.dtype).itemsize
    sub_gran = _sublane_granularity(x_flat.dtype)
    tb, tn = _choose_tiles(B, F, itemsize, sub_gran, tile_bytes)

    grid = (pl.cdiv(B, tb), pl.cdiv(F, tn))
    bytes_accessed = 2 * B * F * itemsize + B * 4  # read x + write out + scales
    cost = pl.CostEstimate(flops=2 * B * F, transcendentals=0,
                           bytes_accessed=bytes_accessed)

    # TODO(synk): optionally skip the input DMA for dropped samples via a
    # scalar-prefetched scale and a constant index_map when scale == 0; it
    # conflicts with batch-tiling, so not worth it at typical drop_prob <= 0.2.
    return pl.pallas_call(
        _drop_path_kernel,
        out_shape=jax.ShapeDtypeStruct((B, F), x_flat.dtype),
        grid=grid,
        in_specs=[
            pl.BlockSpec((tb, tn), lambda i, j: (i, j)),
            pl.BlockSpec((tb, 1), lambda i, j: (i, 0)),
        ],
        out_specs=pl.BlockSpec((tb, tn), lambda i, j: (i, j)),
        compiler_params=pltpu.CompilerParams(
            dimension_semantics=("parallel", "parallel"),
            vmem_limit_bytes=40 * 1024 * 1024,
        ),
        cost_estimate=cost,
    )(x_flat, scale)


def drop_path(x, u, drop_prob, training, *, tile_bytes=None):
    """DropPath forward. x: (B, ...); u: (B,) uniform[0,1) per-sample draws."""
    if drop_prob == 0.0 or not training:
        return x
    keep_prob = 1.0 - float(drop_prob)
    B = x.shape[0]
    F = math.prod(x.shape[1:])

    # Per-sample scale in f32: floor(keep_prob + U) in {0,1}, divided by keep_prob.
    scale = jnp.floor(keep_prob + u.astype(jnp.float32)) / jnp.float32(keep_prob)

    total_bytes = B * F * jnp.dtype(x.dtype).itemsize
    if total_bytes < _MIN_PALLAS_BYTES:
        # Tiny tensors: fixed pallas_call overhead dominates; fused XLA
        # elementwise is strictly faster on every generation.
        bshape = (B,) + (1,) * (x.ndim - 1)
        return (x.astype(jnp.float32) * scale.reshape(bshape)).astype(x.dtype)

    if tile_bytes is None:
        tile_bytes = _default_tile_bytes()

    out_flat = _drop_path_pallas(x.reshape(B, F), scale.reshape(B, 1), tile_bytes)
    return out_flat.reshape(x.shape)


class DropPath:
    """Mirror of the PyTorch DropPath module (stochastic depth)."""

    def __init__(self, drop_prob=None):
        self.drop_prob = 0.0 if drop_prob is None else float(drop_prob)
        self.training = True

    def __call__(self, x, key, *, tile_bytes=None):
        if self.drop_prob == 0.0 or not self.training:
            return x
        u = jax.random.uniform(key, (x.shape[0],), dtype=jnp.float32)
        return drop_path(x, u, self.drop_prob, self.training, tile_bytes=tile_bytes)


if __name__ == "__main__":
    root = jax.random.PRNGKey(0)
    keys = jax.random.split(root, 8)

    def ref_drop_path(x, u, p):
        keep = 1.0 - p
        bshape = (x.shape[0],) + (1,) * (x.ndim - 1)
        scale = (jnp.floor(keep + u) / jnp.float32(keep)).reshape(bshape)
        return (x.astype(jnp.float32) * scale).astype(x.dtype)

    # 1) tiny ViT-token tensor: plain-JAX bypass path.
    x0 = jax.random.normal(keys[0], (2, 8, 32), dtype=jnp.float32)
    u0 = jax.random.uniform(keys[1], (2,), dtype=jnp.float32)
    out0 = jax.block_until_ready(drop_path(x0, u0, 0.2, True))
    assert out0.shape == x0.shape and out0.dtype == x0.dtype
    assert jnp.allclose(out0, ref_drop_path(x0, u0, 0.2), atol=1e-6, rtol=1e-6)

    # 2) ViT-like sample with ragged feature count (F % 128 != 0): Pallas path,
    #    single full-extent block -> masked partial lane tile.
    x1 = jax.random.normal(keys[2], (4, 197, 192), dtype=jnp.float32)
    u1 = jax.random.uniform(keys[3], (4,), dtype=jnp.float32)
    out1 = jax.block_until_ready(drop_path(x1, u1, 0.2, True))
    assert jnp.allclose(out1, ref_drop_path(x1, u1, 0.2), atol=1e-6, rtol=1e-6)

    #    Same tensor with a small forced tile -> multiple feature tiles with a
    #    ragged trailing block.
    out1b = jax.block_until_ready(drop_path(x1, u1, 0.2, True, tile_bytes=128 * 1024))
    assert jnp.allclose(out1b, ref_drop_path(x1, u1, 0.2), atol=1e-6, rtol=1e-6)

    # 3) Ragged batch tiling (B % tb != 0) plus multiple feature tiles.
    x2 = jax.random.normal(keys[4], (20, 64, 100), dtype=jnp.float32)
    u2 = jax.random.uniform(keys[5], (20,), dtype=jnp.float32)
    out2 = jax.block_until_ready(drop_path(x2, u2, 0.5, True, tile_bytes=64 * 1024))
    assert jnp.allclose(out2, ref_drop_path(x2, u2, 0.5), atol=1e-6, rtol=1e-6)

    # 4) bf16 input (sublane packing granularity 16) with ragged F and a
    #    multi-step grid on both axes.
    x3 = jax.random.normal(keys[6], (32, 197, 64), dtype=jnp.float32).astype(jnp.bfloat16)
    u3 = jax.random.uniform(keys[7], (32,), dtype=jnp.float32)
    out3 = jax.block_until_ready(drop_path(x3, u3, 0.2, True, tile_bytes=128 * 1024))
    assert out3.dtype == jnp.bfloat16
    assert jnp.allclose(out3.astype(jnp.float32),
                        ref_drop_path(x3, u3, 0.2).astype(jnp.float32),
                        atol=1e-2, rtol=1e-2)

    # 5) eval / drop_prob == 0 -> identity (no kernel launch).
    module = DropPath(drop_prob=0.2)
    module.training = False
    assert jnp.array_equal(jax.block_until_ready(module(x0, keys[1])), x0)
    module.training = True
    out_mod = jax.block_until_ready(module(x1, keys[3]))
    assert out_mod.shape == x1.shape and out_mod.dtype == x1.dtype

    print("KERNEL_OK")
</pallas_src>

<mosaic_0001>
module attributes {stable_mosaic.version = 11 : i64} {
  func.func @_drop_path_kernel(%arg0: i32, %arg1: i32, %arg2: memref<4x37824xf32, #tpu.memory_space<vmem>>, %arg3: memref<4x1xf32, #tpu.memory_space<vmem>>, %arg4: memref<4x37824xf32, #tpu.memory_space<vmem>>) attributes {dimension_semantics = [#tpu.dimension_semantics<parallel>, #tpu.dimension_semantics<parallel>], iteration_bounds = array<i64: 1, 1>, scalar_prefetch = 0 : i64, scratch_operands = 0 : i64, tpu.core_type = #tpu.core_type<tc>, window_params = [{transform_indices = @transform_0, window_bounds = array<i64: 4, 37824>}, {transform_indices = @transform_1, window_bounds = array<i64: 4, 1>}, {transform_indices = @transform_2, window_bounds = array<i64: 4, 37824>}]} {
    %c0 = arith.constant 0 : index
    %c0_0 = arith.constant 0 : index
    %0 = vector.load %arg3[%c0, %c0_0] : memref<4x1xf32, #tpu.memory_space<vmem>>, vector<4x1xf32>
    %c0_1 = arith.constant 0 : index
    %c0_2 = arith.constant 0 : index
    %1 = vector.load %arg2[%c0_1, %c0_2] : memref<4x37824xf32, #tpu.memory_space<vmem>>, vector<4x37824xf32>
    %2 = vector.broadcast %0 : vector<4x1xf32> to vector<4x37824xf32>
    %3 = arith.mulf %1, %2 : vector<4x37824xf32>
    %c0_3 = arith.constant 0 : index
    %c0_4 = arith.constant 0 : index
    %4 = vector.load %arg4[%c0_3, %c0_4] : memref<4x37824xf32, #tpu.memory_space<vmem>>, vector<4x37824xf32>
    tpu.vector_store %arg4[%c0_3, %c0_4], %3 {strides = array<i32>} : memref<4x37824xf32, #tpu.memory_space<vmem>>, vector<4x37824xf32>,
    return
  }
  func.func @transform_0(%arg0: i32, %arg1: i32) -> (i32, i32) {
    %c0_i32 = arith.constant 0 : i32
    return %arg0, %arg1 : i32, i32
  }
  func.func @transform_1(%arg0: i32, %arg1: i32) -> (i32, i32) {
    %c0_i32 = arith.constant 0 : i32
    %c0_i32_0 = arith.constant 0 : i32
    return %arg0, %c0_i32 : i32, i32
  }
  func.func @transform_2(%arg0: i32, %arg1: i32) -> (i32, i32) {
    %c0_i32 = arith.constant 0 : i32
    return %arg0, %arg1 : i32, i32
  }
}

</mosaic_0001>

<llo_original>
// kernel: tpu_custom_call.1
$region0: #{tpu_custom_call.1}
  #allocation0 [shape = 'u32[]', space=smem, size = 0x4, offset = 0x4, fixed_abs, tag = 'smem constant byte address 0x4 - core index']
  #allocation1 [shape = 'u32[144,128]{1,0:T(1,128)}', space=vmem, size = 0x12000, scoped, tag = 'internal scratch']
  %s0 = inlined_call_operand.hbm [shape: f32[4,37824], index: 0, kind: input, shape index: {}]
  %s1 = inlined_call_operand.vmem [shape: f32[4,1], index: 1, kind: input, shape index: {}]
  %s2 = inlined_call_operand.hbm [shape: f32[4,37824], index: 2, kind: output, shape index: {}]
  %s3 = sld [smem:[#allocation0]]
  $region22: #{tpu_custom_call.1} parent=0
    _
  %s5 = ssub.s32 1, %s3
  %s6 = scalar_select 0, %s5, %s3
  $region1: #{tpu_custom_call.1} parent=0
    #allocation2 [shape = 'u8[606208]{0}', space=vmem, size = 0x94000, scoped, tag = 'input window, operand 0, single buffered']
    #allocation3 [shape = 's32[1]{0}', space=sflag, size = 0x4, scoped, tag = 'scoped memory for tpu_custom_call.1']
    #allocation4 [shape = 's32[1]{0}', space=sflag, size = 0x4, scoped, tag = 'scoped memory for tpu_custom_call.1']
    #allocation5 [shape = 'u8[606208]{0}', space=vmem, size = 0x94000, scoped, tag = 'output window, operand 0, single buffered']
    %7 = vsyncpa [#allocation3], 0
    %8 = vsyncpa [#allocation4], 0
    // Predicated region
    $region2: #{tpu_custom_call.1} parent=1 // pred_check
      _
    $region3: #{tpu_custom_call.1} parent=1 // pred_check_branch
      %10 = sbr.rel (0) target = $region5
    $region4: #{tpu_custom_call.1} parent=1 // pred_region
      %s12 = ssub.s32 18944, 18944
      %13 = vsyncadd [#allocation3], %s12
      %s15 = sshll.u32 [#allocation2], 4
      %s16 = int_to_ptr.vmem [resolvable:$true] %s15
      %18 = dma.hbm_to_vmem [thread:$0]  %s0, 18944, %s16, [#allocation3]
    $region5: #{tpu_custom_call.1} parent=1 // pred_fallthru
      _
    // Predicated region
    $region6: #{tpu_custom_call.1} parent=1 // pred_check
      _
    $region7: #{tpu_custom_call.1} parent=1 // pred_check_branch
      %20 = sbr.rel (0) target = $region9
    $region8: #{tpu_custom_call.1} parent=1 // pred_region
      _
    $region9: #{tpu_custom_call.1} parent=1 // pred_fallthru
      _
    // Predicated region
    $region10: #{tpu_custom_call.1} parent=1 // pred_check
      _
    $region11: #{tpu_custom_call.1} parent=1 // pred_check_branch
      %22 = sbr.rel (0) target = $region13
    $region12: #{tpu_custom_call.1} parent=1 // pred_region
      %23 = dma.done [#allocation3], 18944
    $region13: #{tpu_custom_call.1} parent=1 // pred_fallthru
      _
    %v24 = vld [vmem:[%s1] sm:$0xf]
    %v25 = vld [vmem:[#allocation2] sm:$0xff]
    %v26 = vld [vmem:[#allocation2 + $0x8] sm:$0xff]
    %v27 = vld [vmem:[#allocation2 + $0x10] sm:$0xff]
    %v28 = vld [vmem:[#allocation2 + $0x18] sm:$0xff]
    %v29 = vld [vmem:[#allocation2 + $0x20] sm:$0xff]
    %v30 = vld [vmem:[#allocation2 + $0x28] sm:$0xff]
    %v31 = vld [vmem:[#allocation2 + $0x30] sm:$0xff]
    %v32 = vld [vmem:[#allocation2 + $0x38] sm:$0xff]
    %v33 = vld [vmem:[#allocation2 + $0x40] sm:$0xff]
    %v34 = vld [vmem:[#allocation2 + $0x48] sm:$0xff]
    %v35 = vld [vmem:[#allocation2 + $0x50] sm:$0xff]
    %v36 = vld [vmem:[#allocation2 + $0x58] sm:$0xff]
    %v37 = vld [vmem:[#allocation2 + $0x60] sm:$0xff]
    %v38 = vld [vmem:[#allocation2 + $0x68] sm:$0xff]
    %v39 = vld [vmem:[#allocation2 + $0x70] sm:$0xff]
    %v40 = vld [vmem:[#allocation2 + $0x78] sm:$0xff]
    %v41 = vld [vmem:[#allocation2 + $0x80] sm:$0xff]
    %v42 = vld [vmem:[#allocation2 + $0x88] sm:$0xff]
    %v43 = vld [vmem:[#allocation2 + $0x90] sm:$0xff]
    %v44 = vld [vmem:[#allocation2 + $0x98] sm:$0xff]
    %v45 = vld [vmem:[#allocation2 + $0xa0] sm:$0xff]
    %v46 = vld [vmem:[#allocation2 + $0xa8] sm:$0xff]
    %v47 = vld [vmem:[#allocation2 + $0xb0] sm:$0xff]
    %v48 = vld [vmem:[#allocation2 + $0xb8] sm:$0xff]
    %v49 = vld [vmem:[#allocation2 + $0xc0] sm:$0xff]
    %v50 = vld [vmem:[#allocation2 + $0xc8] sm:$0xff]
    %v51 = vld [vmem:[#allocation2 + $0xd0] sm:$0xff]
    %v52 = vld [vmem:[#allocation2 + $0xd8] sm:$0xff]
    %v53 = vld [vmem:[#allocation2 + $0xe0] sm:$0xff]
    %v54 = vld [vmem:[#allocation2 + $0xe8] sm:$0xff]
    %v55 = vld [vmem:[#allocation2 + $0xf0] sm:$0xff]
    %v56 = vld [vmem:[#allocation2 + $0xf8] sm:$0xff]
    %v57 = vld [vmem:[#allocation2 + $0x100] sm:$0xff]
    %v58 = vld [vmem:[#allocation2 + $0x108] sm:$0xff]
    %v59 = vld [vmem:[#allocation2 + $0x110] sm:$0xff]
    %v60 = vld [vmem:[#allocation2 + $0x118] sm:$0xff]
    %v61 = vld [vmem:[#allocation2 + $0x120] sm:$0xff]
    %v62 = vld [vmem:[#allocation2 + $0x128] sm:$0xff]
    %v63 = vld [vmem:[#allocation2 + $0x130] sm:$0xff]
    %v64 = vld [vmem:[#allocation2 + $0x138] sm:$0xff]
    %v65 = vld [vmem:[#allocation2 + $0x140] sm:$0xff]
    %v66 = vld [vmem:[#allocation2 + $0x148] sm:$0xff]
    %v67 = vld [vmem:[#allocation2 + $0x150] sm:$0xff]
    %v68 = vld [vmem:[#allocation2 + $0x158] sm:$0xff]
    %v69 = vld [vmem:[#allocation2 + $0x160] sm:$0xff]
    %v70 = vld [vmem:[#allocation2 + $0x168] sm:$0xff]
    %v71 = vld [vmem:[#allocation2 + $0x170] sm:$0xff]
    %v72 = vld [vmem:[#allocation2 + $0x178] sm:$0xff]
    %v73 = vld [vmem:[#allocation2 + $0x180] sm:$0xff]
    %v74 = vld [vmem:[#allocation2 + $0x188] sm:$0xff]
    %v75 = vld [vmem:[#allocation2 + $0x190] sm:$0xff]
    %v76 = vld [vmem:[#allocation2 + $0x198] sm:$0xff]
    %v77 = vld [vmem:[#allocation2 + $0x1a0] sm:$0xff]
    %v78 = vld [vmem:[#allocation2 + $0x1a8] sm:$0xff]
    %v79 = vld [vmem:[#allocation2 + $0x1b0] sm:$0xff]
    %v80 = vld [vmem:[#allocation2 + $0x1b8] sm:$0xff]
    %v81 = vld [vmem:[#allocation2 + $0x1c0] sm:$0xff]
    %v82 = vld [vmem:[#allocation2 + $0x1c8] sm:$0xff]
    %v83 = vld [vmem:[#allocation2 + $0x1d0] sm:$0xff]
    %v84 = vld [vmem:[#allocation2 + $0x1d8] sm:$0xff]
    %v85 = vld [vmem:[#allocation2 + $0x1e0] sm:$0xff]
    %v86 = vld [vmem:[#allocation2 + $0x1e8] sm:$0xff]
    %v87 = vld [vmem:[#allocation2 + $0x1f0] sm:$0xff]
    %v88 = vld [vmem:[#allocation2 + $0x1f8] sm:$0xff]
    %v89 = vld [vmem:[#allocation2 + $0x200] sm:$0xff]
    %v90 = vld [vmem:[#allocation2 + $0x208] sm:$0xff]
    %v91 = vld [vmem:[#allocation2 + $0x210] sm:$0xff]
    %v92 = vld [vmem:[#allocation2 + $0x218] sm:$0xff]
    %v93 = vld [vmem:[#allocation2 + $0x220] sm:$0xff]
    %v94 = vld [vmem:[#allocation2 + $0x228] sm:$0xff]
    %v95 = vld [vmem:[#allocation2 + $0x230] sm:$0xff]
    %v96 = vld [vmem:[#allocation2 + $0x238] sm:$0xff]
    %v97 = vld [vmem:[#allocation2 + $0x240] sm:$0xff]
    %v98 = vld [vmem:[#allocation2 + $0x248] sm:$0xff]
    %v99 = vld [vmem:[#allocation2 + $0x250] sm:$0xff]
    %v100 = vld [vmem:[#allocation2 + $0x258] sm:$0xff]
    %v101 = vld [vmem:[#allocation2 + $0x260] sm:$0xff]
    %v102 = vld [vmem:[#allocation2 + $0x268] sm:$0xff]
    %v103 = vld [vmem:[#allocation2 + $0x270] sm:$0xff]
    %v104 = vld [vmem:[#allocation2 + $0x278] sm:$0xff]
    %v105 = vld [vmem:[#allocation2 + $0x280] sm:$0xff]
    %v106 = vld [vmem:[#allocation2 + $0x288] sm:$0xff]
    %v107 = vld [vmem:[#allocation2 + $0x290] sm:$0xff]
    %v108 = vld [vmem:[#allocation2 + $0x298] sm:$0xff]
    %v109 = vld [vmem:[#allocation2 + $0x2a0] sm:$0xff]
    %v110 = vld [vmem:[#allocation2 + $0x2a8] sm:$0xff]
    %v111 = vld [vmem:[#allocation2 + $0x2b0] sm:$0xff]
    %v112 = vld [vmem:[#allocation2 + $0x2b8] sm:$0xff]
    %v113 = vld [vmem:[#allocation2 + $0x2c0] sm:$0xff]
    %v114 = vld [vmem:[#allocation2 + $0x2c8] sm:$0xff]
    %v115 = vld [vmem:[#allocation2 + $0x2d0] sm:$0xff]
    %v116 = vld [vmem:[#allocation2 + $0x2d8] sm:$0xff]
    %v117 = vld [vmem:[#allocation2 + $0x2e0] sm:$0xff]
    %v118 = vld [vmem:[#allocation2 + $0x2e8] sm:$0xff]
    %v119 = vld [vmem:[#allocation2 + $0x2f0] sm:$0xff]
    %v120 = vld [vmem:[#allocation2 + $0x2f8] sm:$0xff]
    %v121 = vld [vmem:[#allocation2 + $0x300] sm:$0xff]
    %v122 = vld [vmem:[#allocation2 + $0x308] sm:$0xff]
    %v123 = vld [vmem:[#allocation2 + $0x310] sm:$0xff]
    %v124 = vld [vmem:[#allocation2 + $0x318] sm:$0xff]
    %v125 = vld [vmem:[#allocation2 + $0x320] sm:$0xff]
    %v126 = vld [vmem:[#allocation2 + $0x328] sm:$0xff]
    %v127 = vld [vmem:[#allocation2 + $0x330] sm:$0xff]
    %v128 = vld [vmem:[#allocation2 + $0x338] sm:$0xff]
    %v129 = vld [vmem:[#allocation2 + $0x340] sm:$0xff]
    %v130 = vld [vmem:[#allocation2 + $0x348] sm:$0xff]
    %v131 = vld [vmem:[#allocation2 + $0x350] sm:$0xff]
    %v132 = vld [vmem:[#allocation2 + $0x358] sm:$0xff]
    %v133 = vld [vmem:[#allocation2 + $0x360] sm:$0xff]
    %v134 = vld [vmem:[#allocation2 + $0x368] sm:$0xff]
    %v135 = vld [vmem:[#allocation2 + $0x370] sm:$0xff]
    %v136 = vld [vmem:[#allocation2 + $0x378] sm:$0xff]
    %v137 = vld [vmem:[#allocation2 + $0x380] sm:$0xff]
    %v138 = vld [vmem:[#allocation2 + $0x388] sm:$0xff]
    %v139 = vld [vmem:[#allocation2 + $0x390] sm:$0xff]
    %v140 = vld [vmem:[#allocation2 + $0x398] sm:$0xff]
    %v141 = vld [vmem:[#allocation2 + $0x3a0] sm:$0xff]
    %v142 = vld [vmem:[#allocation2 + $0x3a8] sm:$0xff]
    %v143 = vld [vmem:[#allocation2 + $0x3b0] sm:$0xff]
    %v144 = vld [vmem:[#allocation2 + $0x3b8] sm:$0xff]
    %v145 = vld [vmem:[#allocation2 + $0x3c0] sm:$0xff]
    %v146 = vld [vmem:[#allocation2 + $0x3c8] sm:$0xff]
    %v147 = vld [vmem:[#allocation2 + $0x3d0] sm:$0xff]
    %v148 = vld [vmem:[#allocation2 + $0x3d8] sm:$0xff]
    %v149 = vld [vmem:[#allocation2 + $0x3e0] sm:$0xff]
    %v150 = vld [vmem:[#allocation2 + $0x3e8] sm:$0xff]
    %v151 = vld [vmem:[#allocation2 + $0x3f0] sm:$0xff]
    %v152 = vld [vmem:[#allocation2 + $0x3f8] sm:$0xff]
    %v153 = vld [vmem:[#allocation2 + $0x400] sm:$0xff]
    %v154 = vld [vmem:[#allocation2 + $0x408] sm:$0xff]
    %v155 = vld [vmem:[#allocation2 + $0x410] sm:$0xff]
    %v156 = vld [vmem:[#allocation2 + $0x418] sm:$0xff]
    %v157 = vld [vmem:[#allocation2 + $0x420] sm:$0xff]
    %v158 = vld [vmem:[#allocation2 + $0x428] sm:$0xff]
    %v159 = vld [vmem:[#allocation2 + $0x430] sm:$0xff]
    %v160 = vld [vmem:[#allocation2 + $0x438] sm:$0xff]
    %v161 = vld [vmem:[#allocation2 + $0x440] sm:$0xff]
    %v162 = vld [vmem:[#allocation2 + $0x448] sm:$0xff]
    %v163 = vld [vmem:[#allocation2 + $0x450] sm:$0xff]
    %v164 = vld [vmem:[#allocation2 + $0x458] sm:$0xff]
    %v165 = vld [vmem:[#allocation2 + $0x460] sm:$0xff]
    %v166 = vld [vmem:[#allocation2 + $0x468] sm:$0xff]
    %v167 = vld [vmem:[#allocation2 + $0x470] sm:$0xff]
    %v168 = vld [vmem:[#allocation2 + $0x478] sm:$0xff]
    %v169 = vld [vmem:[#allocation2 + $0x480] sm:$0xff]
    %v170 = vld [vmem:[#allocation2 + $0x488] sm:$0xff]
    %v171 = vld [vmem:[#allocation2 + $0x490] sm:$0xff]
    %v172 = vld [vmem:[#allocation2 + $0x498] sm:$0xff]
    %174 = vset.pattern.permute.xlu0 0
    %175 = vperm.xlu0 %174, %v24
    %v176 = vpop.permute.xlu0 %175
    %v178 = vunpack.c.l.s4 839922192
    %v179 = vunpack.c.0.s8 %v178
    %v180 = vlaneseq
    %v181 = vshrl.u32 %v180, 7
    %v182 = vsub.s32 %v179, %v181
    %v183 = vrot.slane %v176, %v182
    %v185 = vmul.f32 %v25, %v183
    %v186 = vmul.f32 %v26, %v183
    %v187 = vmul.f32 %v27, %v183
    %v188 = vmul.f32 %v28, %v183
    %v189 = vmul.f32 %v29, %v183
    %v190 = vmul.f32 %v30, %v183
    %v191 = vmul.f32 %v31, %v183
    %v192 = vmul.f32 %v32, %v183
    %v193 = vmul.f32 %v33, %v183
    %v194 = vmul.f32 %v34, %v183
    %v195 = vmul.f32 %v35, %v183
    %v196 = vmul.f32 %v36, %v183
    %v197 = vmul.f32 %v37, %v183
    %v198 = vmul.f32 %v38, %v183
    %v199 = vmul.f32 %v39, %v183
    %v200 = vmul.f32 %v40, %v183
    %v201 = vmul.f32 %v41, %v183
    %v202 = vmul.f32 %v42, %v183
    %v203 = vmul.f32 %v43, %v183
    %v204 = vmul.f32 %v44, %v183
    %v205 = vmul.f32 %v45, %v183
    %v206 = vmul.f32 %v46, %v183
    %v207 = vmul.f32 %v47, %v183
    %v208 = vmul.f32 %v48, %v183
    %v209 = vmul.f32 %v49, %v183
    %v210 = vmul.f32 %v50, %v183
    %v211 = vmul.f32 %v51, %v183
    %v212 = vmul.f32 %v52, %v183
    %v213 = vmul.f32 %v53, %v183
    %v214 = vmul.f32 %v54, %v183
    %v215 = vmul.f32 %v55, %v183
    %v216 = vmul.f32 %v56, %v183
    %v217 = vmul.f32 %v57, %v183
    %v218 = vmul.f32 %v58, %v183
    %v219 = vmul.f32 %v59, %v183
    %v220 = vmul.f32 %v60, %v183
    %v221 = vmul.f32 %v61, %v183
    %v222 = vmul.f32 %v62, %v183
    %v223 = vmul.f32 %v63, %v183
    %v224 = vmul.f32 %v64, %v183
    %v225 = vmul.f32 %v65, %v183
    %v226 = vmul.f32 %v66, %v183
    %v227 = vmul.f32 %v67, %v183
    %v228 = vmul.f32 %v68, %v183
    %v229 = vmul.f32 %v69, %v183
    %v230 = vmul.f32 %v70, %v183
    %v231 = vmul.f32 %v71, %v183
    %v232 = vmul.f32 %v72, %v183
    %v233 = vmul.f32 %v73, %v183
    %v234 = vmul.f32 %v74, %v183
    %v235 = vmul.f32 %v75, %v183
    %v236 = vmul.f32 %v76, %v183
    %v237 = vmul.f32 %v77, %v183
    %v238 = vmul.f32 %v78, %v183
    %v239 = vmul.f32 %v79, %v183
    %v240 = vmul.f32 %v80, %v183
    %v241 = vmul.f32 %v81, %v183
    %v242 = vmul.f32 %v82, %v183
    %v243 = vmul.f32 %v83, %v183
    %v244 = vmul.f32 %v84, %v183
    %v245 = vmul.f32 %v85, %v183
    %v246 = vmul.f32 %v86, %v183
    %v247 = vmul.f32 %v87, %v183
    %v248 = vmul.f32 %v88, %v183
    %v249 = vmul.f32 %v89, %v183
    %v250 = vmul.f32 %v90, %v183
    %v251 = vmul.f32 %v91, %v183
    %v252 = vmul.f32 %v92, %v183
    %v253 = vmul.f32 %v93, %v183
    %v254 = vmul.f32 %v94, %v183
    %v255 = vmul.f32 %v95, %v183
    %v256 = vmul.f32 %v96, %v183
    %v257 = vmul.f32 %v97, %v183
    %v258 = vmul.f32 %v98, %v183
    %v259 = vmul.f32 %v99, %v183
    %v260 = vmul.f32 %v100, %v183
    %v261 = vmul.f32 %v101, %v183
    %v262 = vmul.f32 %v102, %v183
    %v263 = vmul.f32 %v103, %v183
    %v264 = vmul.f32 %v104, %v183
    %v265 = vmul.f32 %v105, %v183
    %v266 = vmul.f32 %v106, %v183
    %v267 = vmul.f32 %v107, %v183
    %v268 = vmul.f32 %v108, %v183
    %v269 = vmul.f32 %v109, %v183
    %v270 = vmul.f32 %v110, %v183
    %v271 = vmul.f32 %v111, %v183
    %v272 = vmul.f32 %v112, %v183
    %v273 = vmul.f32 %v113, %v183
    %v274 = vmul.f32 %v114, %v183
    %v275 = vmul.f32 %v115, %v183
    %v276 = vmul.f32 %v116, %v183
    %v277 = vmul.f32 %v117, %v183
    %v278 = vmul.f32 %v118, %v183
    %v279 = vmul.f32 %v119, %v183
    %v280 = vmul.f32 %v120, %v183
    %v281 = vmul.f32 %v121, %v183
    %v282 = vmul.f32 %v122, %v183
    %v283 = vmul.f32 %v123, %v183
    %v284 = vmul.f32 %v124, %v183
    %v285 = vmul.f32 %v125, %v183
    %v286 = vmul.f32 %v126, %v183
    %v287 = vmul.f32 %v127, %v183
    %v288 = vmul.f32 %v128, %v183
    %v289 = vmul.f32 %v129, %v183
    %v290 = vmul.f32 %v130, %v183
    %v291 = vmul.f32 %v131, %v183
    %v292 = vmul.f32 %v132, %v183
    %v293 = vmul.f32 %v133, %v183
    %v294 = vmul.f32 %v134, %v183
    %v295 = vmul.f32 %v135, %v183
    %v296 = vmul.f32 %v136, %v183
    %v297 = vmul.f32 %v137, %v183
    %v298 = vmul.f32 %v138, %v183
    %v299 = vmul.f32 %v139, %v183
    %v300 = vmul.f32 %v140, %v183
    %v301 = vmul.f32 %v141, %v183
    %v302 = vmul.f32 %v142, %v183
    %v303 = vmul.f32 %v143, %v183
    %v304 = vmul.f32 %v144, %v183
    %v305 = vmul.f32 %v145, %v183
    %v306 = vmul.f32 %v146, %v183
    %v307 = vmul.f32 %v147, %v183
    %v308 = vmul.f32 %v148, %v183
    %v309 = vmul.f32 %v149, %v183
    %v310 = vmul.f32 %v150, %v183
    %v311 = vmul.f32 %v151, %v183
    %v312 = vmul.f32 %v152, %v183
    %v313 = vmul.f32 %v153, %v183
    %v314 = vmul.f32 %v154, %v183
    %v315 = vmul.f32 %v155, %v183
    %v316 = vmul.f32 %v156, %v183
    %v317 = vmul.f32 %v157, %v183
    %v318 = vmul.f32 %v158, %v183
    %v319 = vmul.f32 %v159, %v183
    %v320 = vmul.f32 %v160, %v183
    %v321 = vmul.f32 %v161, %v183
    %v322 = vmul.f32 %v162, %v183
    %v323 = vmul.f32 %v163, %v183
    %v324 = vmul.f32 %v164, %v183
    %v325 = vmul.f32 %v165, %v183
    %v326 = vmul.f32 %v166, %v183
    %v327 = vmul.f32 %v167, %v183
    %v328 = vmul.f32 %v168, %v183
    %v329 = vmul.f32 %v169, %v183
    %v330 = vmul.f32 %v170, %v183
    %v331 = vmul.f32 %v171, %v183
    %v332 = vmul.f32 %v172, %v183
    %333 = vst [vmem:[#allocation5] sm:$0xff] %v185
    %334 = vst [vmem:[#allocation5 + $0x8] sm:$0xff] %v186
    %335 = vst [vmem:[#allocation5 + $0x10] sm:$0xff] %v187
    %336 = vst [vmem:[#allocation5 + $0x18] sm:$0xff] %v188
    %337 = vst [vmem:[#allocation5 + $0x20] sm:$0xff] %v189
    %338 = vst [vmem:[#allocation5 + $0x28] sm:$0xff] %v190
    %339 = vst [vmem:[#allocation5 + $0x30] sm:$0xff] %v191
    %340 = vst [vmem:[#allocation5 + $0x38] sm:$0xff] %v192
    %341 = vst [vmem:[#allocation5 + $0x40] sm:$0xff] %v193
    %342 = vst [vmem:[#allocation5 + $0x48] sm:$0xff] %v194
    %343 = vst [vmem:[#allocation5 + $0x50] sm:$0xff] %v195
    %344 = vst [vmem:[#allocation5 + $0x58] sm:$0xff] %v196
    %345 = vst [vmem:[#allocation5 + $0x60] sm:$0xff] %v197
    %346 = vst [vmem:[#allocation5 + $0x68] sm:$0xff] %v198
    %347 = vst [vmem:[#allocation5 + $0x70] sm:$0xff] %v199
    %348 = vst [vmem:[#allocation5 + $0x78] sm:$0xff] %v200
    %349 = vst [vmem:[#allocation5 + $0x80] sm:$0xff] %v201
    %350 = vst [vmem:[#allocation5 + $0x88] sm:$0xff] %v202
    %351 = vst [vmem:[#allocation5 + $0x90] sm:$0xff] %v203
    %352 = vst [vmem:[#allocation5 + $0x98] sm:$0xff] %v204
    %353 = vst [vmem:[#allocation5 + $0xa0] sm:$0xff] %v205
    %354 = vst [vmem:[#allocation5 + $0xa8] sm:$0xff] %v206
    %355 = vst [vmem:[#allocation5 + $0xb0] sm:$0xff] %v207
    %356 = vst [vmem:[#allocation5 + $0xb8] sm:$0xff] %v208
    %357 = vst [vmem:[#allocation5 + $0xc0] sm:$0xff] %v209
    %358 = vst [vmem:[#allocation5 + $0xc8] sm:$0xff] %v210
    %359 = vst [vmem:[#allocation5 + $0xd0] sm:$0xff] %v211
    %360 = vst [vmem:[#allocation5 + $0xd8] sm:$0xff] %v212
    %361 = vst [vmem:[#allocation5 + $0xe0] sm:$0xff] %v213
    %362 = vst [vmem:[#allocation5 + $0xe8] sm:$0xff] %v214
    %363 = vst [vmem:[#allocation5 + $0xf0] sm:$0xff] %v215
    %364 = vst [vmem:[#allocation5 + $0xf8] sm:$0xff] %v216
    %365 = vst [vmem:[#allocation5 + $0x100] sm:$0xff] %v217
    %366 = vst [vmem:[#allocation5 + $0x108] sm:$0xff] %v218
    %367 = vst [vmem:[#allocation5 + $0x110] sm:$0xff] %v219
    %368 = vst [vmem:[#allocation5 + $0x118] sm:$0xff] %v220
    %369 = vst [vmem:[#allocation5 + $0x120] sm:$0xff] %v221
    %370 = vst [vmem:[#allocation5 + $0x128] sm:$0xff] %v222
    %371 = vst [vmem:[#allocation5 + $0x130] sm:$0xff] %v223
    %372 = vst [vmem:[#allocation5 + $0x138] sm:$0xff] %v224
    %373 = vst [vmem:[#allocation5 + $0x140] sm:$0xff] %v225
    %374 = vst [vmem:[#allocation5 + $0x148] sm:$0xff] %v226
    %375 = vst [vmem:[#allocation5 + $0x150] sm:$0xff] %v227
    %376 = vst [vmem:[#allocation5 + $0x158] sm:$0xff] %v228
    %377 = vst [vmem:[#allocation5 + $0x160] sm:$0xff] %v229
    %378 = vst [vmem:[#allocation5 + $0x168] sm:$0xff] %v230
    %379 = vst [vmem:[#allocation5 + $0x170] sm:$0xff] %v231
    %380 = vst [vmem:[#allocation5 + $0x178] sm:$0xff] %v232
    %381 = vst [vmem:[#allocation5 + $0x180] sm:$0xff] %v233
    %382 = vst [vmem:[#allocation5 + $0x188] sm:$0xff] %v234
    %383 = vst [vmem:[#allocation5 + $0x190] sm:$0xff] %v235
    %384 = vst [vmem:[#allocation5 + $0x198] sm:$0xff] %v236
    %385 = vst [vmem:[#allocation5 + $0x1a0] sm:$0xff] %v237
    %386 = vst [vmem:[#allocation5 + $0x1a8] sm:$0xff] %v238
    %387 = vst [vmem:[#allocation5 + $0x1b0] sm:$0xff] %v239
    %388 = vst [vmem:[#allocation5 + $0x1b8] sm:$0xff] %v240
    %389 = vst [vmem:[#allocation5 + $0x1c0] sm:$0xff] %v241
    %390 = vst [vmem:[#allocation5 + $0x1c8] sm:$0xff] %v242
    %391 = vst [vmem:[#allocation5 + $0x1d0] sm:$0xff] %v243
    %392 = vst [vmem:[#allocation5 + $0x1d8] sm:$0xff] %v244
    %393 = vst [vmem:[#allocation5 + $0x1e0] sm:$0xff] %v245
    %394 = vst [vmem:[#allocation5 + $0x1e8] sm:$0xff] %v246
    %395 = vst [vmem:[#allocation5 + $0x1f0] sm:$0xff] %v247
    %396 = vst [vmem:[#allocation5 + $0x1f8] sm:$0xff] %v248
    %397 = vst [vmem:[#allocation5 + $0x200] sm:$0xff] %v249
    %398 = vst [vmem:[#allocation5 + $0x208] sm:$0xff] %v250
    %399 = vst [vmem:[#allocation5 + $0x210] sm:$0xff] %v251
    %400 = vst [vmem:[#allocation5 + $0x218] sm:$0xff] %v252
    %401 = vst [vmem:[#allocation5 + $0x220] sm:$0xff] %v253
    %402 = vst [vmem:[#allocation5 + $0x228] sm:$0xff] %v254
    %403 = vst [vmem:[#allocation5 + $0x230] sm:$0xff] %v255
    %404 = vst [vmem:[#allocation5 + $0x238] sm:$0xff] %v256
    %405 = vst [vmem:[#allocation5 + $0x240] sm:$0xff] %v257
    %406 = vst [vmem:[#allocation5 + $0x248] sm:$0xff] %v258
    %407 = vst [vmem:[#allocation5 + $0x250] sm:$0xff] %v259
    %408 = vst [vmem:[#allocation5 + $0x258] sm:$0xff] %v260
    %409 = vst [vmem:[#allocation5 + $0x260] sm:$0xff] %v261
    %410 = vst [vmem:[#allocation5 + $0x268] sm:$0xff] %v262
    %411 = vst [vmem:[#allocation5 + $0x270] sm:$0xff] %v263
    %412 = vst [vmem:[#allocation5 + $0x278] sm:$0xff] %v264
    %413 = vst [vmem:[#allocation5 + $0x280] sm:$0xff] %v265
    %414 = vst [vmem:[#allocation5 + $0x288] sm:$0xff] %v266
    %415 = vst [vmem:[#allocation5 + $0x290] sm:$0xff] %v267
    %416 = vst [vmem:[#allocation5 + $0x298] sm:$0xff] %v268
    %417 = vst [vmem:[#allocation5 + $0x2a0] sm:$0xff] %v269
    %418 = vst [vmem:[#allocation5 + $0x2a8] sm:$0xff] %v270
    %419 = vst [vmem:[#allocation5 + $0x2b0] sm:$0xff] %v271
    %420 = vst [vmem:[#allocation5 + $0x2b8] sm:$0xff] %v272
    %421 = vst [vmem:[#allocation5 + $0x2c0] sm:$0xff] %v273
    %422 = vst [vmem:[#allocation5 + $0x2c8] sm:$0xff] %v274
    %423 = vst [vmem:[#allocation5 + $0x2d0] sm:$0xff] %v275
    %424 = vst [vmem:[#allocation5 + $0x2d8] sm:$0xff] %v276
    %425 = vst [vmem:[#allocation5 + $0x2e0] sm:$0xff] %v277
    %426 = vst [vmem:[#allocation5 + $0x2e8] sm:$0xff] %v278
    %427 = vst [vmem:[#allocation5 + $0x2f0] sm:$0xff] %v279
    %428 = vst [vmem:[#allocation5 + $0x2f8] sm:$0xff] %v280
    %429 = vst [vmem:[#allocation5 + $0x300] sm:$0xff] %v281
    %430 = vst [vmem:[#allocation5 + $0x308] sm:$0xff] %v282
    %431 = vst [vmem:[#allocation5 + $0x310] sm:$0xff] %v283
    %432 = vst [vmem:[#allocation5 + $0x318] sm:$0xff] %v284
    %433 = vst [vmem:[#allocation5 + $0x320] sm:$0xff] %v285
    %434 = vst [vmem:[#allocation5 + $0x328] sm:$0xff] %v286
    %435 = vst [vmem:[#allocation5 + $0x330] sm:$0xff] %v287
    %436 = vst [vmem:[#allocation5 + $0x338] sm:$0xff] %v288
    %437 = vst [vmem:[#allocation5 + $0x340] sm:$0xff] %v289
    %438 = vst [vmem:[#allocation5 + $0x348] sm:$0xff] %v290
    %439 = vst [vmem:[#allocation5 + $0x350] sm:$0xff] %v291
    %440 = vst [vmem:[#allocation5 + $0x358] sm:$0xff] %v292
    %441 = vst [vmem:[#allocation5 + $0x360] sm:$0xff] %v293
    %442 = vst [vmem:[#allocation5 + $0x368] sm:$0xff] %v294
    %443 = vst [vmem:[#allocation5 + $0x370] sm:$0xff] %v295
    %444 = vst [vmem:[#allocation5 + $0x378] sm:$0xff] %v296
    %445 = vst [vmem:[#allocation5 + $0x380] sm:$0xff] %v297
    %446 = vst [vmem:[#allocation5 + $0x388] sm:$0xff] %v298
    %447 = vst [vmem:[#allocation5 + $0x390] sm:$0xff] %v299
    %448 = vst [vmem:[#allocation5 + $0x398] sm:$0xff] %v300
    %449 = vst [vmem:[#allocation5 + $0x3a0] sm:$0xff] %v301
    %450 = vst [vmem:[#allocation5 + $0x3a8] sm:$0xff] %v302
    %451 = vst [vmem:[#allocation5 + $0x3b0] sm:$0xff] %v303
    %452 = vst [vmem:[#allocation5 + $0x3b8] sm:$0xff] %v304
    %453 = vst [vmem:[#allocation5 + $0x3c0] sm:$0xff] %v305
    %454 = vst [vmem:[#allocation5 + $0x3c8] sm:$0xff] %v306
    %455 = vst [vmem:[#allocation5 + $0x3d0] sm:$0xff] %v307
    %456 = vst [vmem:[#allocation5 + $0x3d8] sm:$0xff] %v308
    %457 = vst [vmem:[#allocation5 + $0x3e0] sm:$0xff] %v309
    %458 = vst [vmem:[#allocation5 + $0x3e8] sm:$0xff] %v310
    %459 = vst [vmem:[#allocation5 + $0x3f0] sm:$0xff] %v311
    %460 = vst [vmem:[#allocation5 + $0x3f8] sm:$0xff] %v312
    %461 = vst [vmem:[#allocation5 + $0x400] sm:$0xff] %v313
    %462 = vst [vmem:[#allocation5 + $0x408] sm:$0xff] %v314
    %463 = vst [vmem:[#allocation5 + $0x410] sm:$0xff] %v315
    %464 = vst [vmem:[#allocation5 + $0x418] sm:$0xff] %v316
    %465 = vst [vmem:[#allocation5 + $0x420] sm:$0xff] %v317
    %466 = vst [vmem:[#allocation5 + $0x428] sm:$0xff] %v318
    %467 = vst [vmem:[#allocation5 + $0x430] sm:$0xff] %v319
    %468 = vst [vmem:[#allocation5 + $0x438] sm:$0xff] %v320
    %469 = vst [vmem:[#allocation5 + $0x440] sm:$0xff] %v321
    %470 = vst [vmem:[#allocation5 + $0x448] sm:$0xff] %v322
    %471 = vst [vmem:[#allocation5 + $0x450] sm:$0xff] %v323
    %472 = vst [vmem:[#allocation5 + $0x458] sm:$0xff] %v324
    %473 = vst [vmem:[#allocation5 + $0x460] sm:$0xff] %v325
    %474 = vst [vmem:[#allocation5 + $0x468] sm:$0xff] %v326
    %475 = vst [vmem:[#allocation5 + $0x470] sm:$0xff] %v327
    %476 = vst [vmem:[#allocation5 + $0x478] sm:$0xff] %v328
    %477 = vst [vmem:[#allocation5 + $0x480] sm:$0xff] %v329
    %478 = vst [vmem:[#allocation5 + $0x488] sm:$0xff] %v330
    %479 = vst [vmem:[#allocation5 + $0x490] sm:$0xff] %v331
    %vm480 = vcmask 1043456
    %vm481 = vcmask 523268
    %vm482 = vmor %vm481, %vm480
    %483 = vst.msk [vmem:[#allocation5 + $0x498] sm:$0xff] %vm482, %v332
    // Predicated region
    $region14: #{tpu_custom_call.1} parent=1 // pred_check
      _
    $region15: #{tpu_custom_call.1} parent=1 // pred_check_branch
      %485 = sbr.rel (0) target = $region17
    $region16: #{tpu_custom_call.1} parent=1 // pred_region
      %s487 = ssub.s32 18944, 18944
      %488 = vsyncadd [#allocation4], %s487
      %s490 = sshll.u32 [#allocation5], 4
      %s491 = int_to_ptr.vmem [resolvable:$true] %s490
      %493 = dma.vmem_to_hbm [thread:$0]  %s491, 18944, %s2, [#allocation4]
    $region17: #{tpu_custom_call.1} parent=1 // pred_fallthru
      _
    // Predicated region
    $region18: #{tpu_custom_call.1} parent=1 // pred_check
      _
    $region19: #{tpu_custom_call.1} parent=1 // pred_check_branch
      %495 = sbr.rel (0) target = $region21
    $region20: #{tpu_custom_call.1} parent=1 // pred_region
      %496 = dma.done [#allocation4], 18944
    $region21: #{tpu_custom_call.1} parent=1 // pred_fallthru
      _
    %497 = vsyncpa [#allocation3], 1
    %498 = vsyncpa [#allocation4], 1

</llo_original>
